<compile_context>
chip_gen: v5e
topology: v5e:2x2
jax: 0.10.0
libtpu: 0.0.40
codegen_flags: <defaults>
</compile_context>

<pallas_src>
import math
import functools

import jax
import jax.numpy as jnp
from jax.experimental import pallas as pl
from jax.experimental.pallas import tpu as pltpu


def _curricular_face_kernel(x_ref, w_ref, label_ref, inv_x_ref, inv_w_ref, out_ref, *,
                            s, cos_m, sin_m, th, mm, easy_margin, tile_c):
    # Raw (unnormalized) dot product on the MXU, f32 accumulation: (TB, D) x (TC, D)^T.
    raw = jax.lax.dot_general(
        x_ref[...], w_ref[...],
        dimension_numbers=(((1,), (1,)), ((), ())),
        preferred_element_type=jnp.float32,
    )                                                           # (TB, TC) f32

    # Post-matmul normalization: cosine = (x . w) * inv|x| * inv|w|.
    cosine = raw * inv_x_ref[...] * inv_w_ref[...]              # (TB,1) and (1,TC) broadcast

    # One-hot mask for this class tile (global class id = lane id + tile offset).
    tb, tc = cosine.shape
    base = pl.program_id(0) * tile_c
    class_ids = jax.lax.broadcasted_iota(jnp.int32, (tb, tc), 1) + base
    is_label = class_ids == label_ref[...]                      # (TB, TC)

    # Margin applied only at the label column: extract cos_y per row, fix up per row.
    cos_y = jnp.sum(jnp.where(is_label, cosine, 0.0), axis=-1, keepdims=True)   # (TB,1)
    sin_y = jnp.sqrt(jnp.clip(1.0 - cos_y * cos_y, 0.0, 1.0))
    phi_y = cos_y * cos_m - sin_y * sin_m
    if easy_margin:
        phi_y = jnp.where(cos_y > 0.0, phi_y, cos_y)
    else:
        phi_y = jnp.where(cos_y > th, phi_y, cos_y - mm)
    delta = (phi_y - cos_y) * s                                  # (TB,1); 0-effect rows masked below

    out_ref[...] = (cosine * s + jnp.where(is_label, delta, 0.0)).astype(out_ref.dtype)


def _round_up(x, n):
    return -(-x // n) * n


def _vmem_capacity_bytes():
    try:
        return int(getattr(pltpu.get_tpu_info(), "vmem_capacity_bytes", 64 << 20))
    except Exception:
        return 64 << 20


def curricular_face_loss(x, weight, label, *, s=30.0, m=0.5, easy_margin=False,
                         mm_dtype=jnp.bfloat16, out_dtype=jnp.float32):
    """x: (B, D) float, weight: (C, D) float, label: (B,) int -> (B, C) out_dtype."""
    B, D = x.shape
    C, D2 = weight.shape
    assert D == D2, "in_features mismatch"

    x32 = x.astype(jnp.float32)
    w32 = weight.astype(jnp.float32)

    # Hoisted inverse row norms (F.normalize eps=1e-12 == clamp squared norm at 1e-24).
    inv_x = jax.lax.rsqrt(jnp.maximum(jnp.sum(x32 * x32, axis=-1, keepdims=True), 1e-24))   # (B,1)
    inv_w = jax.lax.rsqrt(jnp.maximum(jnp.sum(w32 * w32, axis=-1), 1e-24))[None, :]          # (1,C)

    mm_bytes = jnp.dtype(mm_dtype).itemsize
    out_bytes = jnp.dtype(out_dtype).itemsize

    # ---------------- generation-aware tile / VMEM sizing ----------------
    B8 = _round_up(B, 8)
    tile_b = B8 if B8 <= 256 else 256            # MXU-aligned batch tile once B is real
    B_pad = _round_up(B8, tile_b)

    vmem_cap = _vmem_capacity_bytes()            # 128 MiB v5e/v6e, 64 MiB per-TC v7x
    budget = int(0.55 * vmem_cap)
    resident = 2 * tile_b * (D * mm_bytes + 12)                    # x tile + label + inv|x| (dbl-buf)
    per_col = 2 * (D * mm_bytes + tile_b * out_bytes + 4)          # W + out + inv|w| per class column
    max_cols = max(128, (budget - resident) // per_col)

    C128 = _round_up(C, 128)
    if C128 <= max_cols:
        tile_c = C128                            # tiny-C fast path: single class tile / grid step
    else:
        tile_c = 128
        while tile_c * 2 <= min(max_cols, 4096):
            tile_c *= 2
    C_pad = _round_up(C, tile_c)

    est_vmem = resident + tile_c * per_col
    vmem_limit = int(min(max(2 * est_vmem, 32 << 20), int(0.75 * vmem_cap)))

    # ---------------- padded / cast operands ----------------
    x_p = jnp.pad(x32, ((0, B_pad - B), (0, 0))).astype(mm_dtype)
    w_p = jnp.pad(w32, ((0, C_pad - C), (0, 0))).astype(mm_dtype)
    label_p = jnp.pad(label.reshape(B, 1).astype(jnp.int32), ((0, B_pad - B), (0, 0)))
    inv_x_p = jnp.pad(inv_x, ((0, B_pad - B), (0, 0)))
    inv_w_p = jnp.pad(inv_w, ((0, 0), (0, C_pad - C)))

    # Class axis outer (W streamed from HBM exactly once), batch axis inner.
    grid = (C_pad // tile_c, B_pad // tile_b)

    kernel = functools.partial(
        _curricular_face_kernel,
        s=float(s), cos_m=math.cos(m), sin_m=math.sin(m),
        th=math.cos(math.pi - m), mm=math.sin(math.pi - m) * m,
        easy_margin=easy_margin, tile_c=tile_c)

    cost = pl.CostEstimate(
        flops=2 * B_pad * C_pad * D,
        transcendentals=B_pad * (C_pad // tile_c),
        bytes_accessed=(mm_bytes * (B_pad * D + C_pad * D)
                        + out_bytes * B_pad * C_pad
                        + 4 * (B_pad + C_pad)),
    )

    out_padded = pl.pallas_call(
        kernel,
        out_shape=jax.ShapeDtypeStruct((B_pad, C_pad), out_dtype),
        grid=grid,
        in_specs=[
            pl.BlockSpec((tile_b, D), lambda j, i: (i, 0)),        # x (mm_dtype)
            pl.BlockSpec((tile_c, D), lambda j, i: (j, 0)),        # W class tile (mm_dtype)
            pl.BlockSpec((tile_b, 1), lambda j, i: (i, 0)),        # label
            pl.BlockSpec((tile_b, 1), lambda j, i: (i, 0)),        # inv|x|
            pl.BlockSpec((1, tile_c), lambda j, i: (0, j)),        # inv|w| (lane-oriented)
        ],
        out_specs=pl.BlockSpec((tile_b, tile_c), lambda j, i: (i, j)),   # lane-dense output tile
        compiler_params=pltpu.CompilerParams(
            dimension_semantics=("parallel", "parallel"),          # megacore on v7x
            vmem_limit_bytes=vmem_limit,
        ),
        cost_estimate=cost,
    )(x_p, w_p, label_p, inv_x_p, inv_w_p)

    return out_padded[:B, :C]


def _reference(x, weight, label, *, s=30.0, m=0.5, easy_margin=False):
    eps = 1e-12
    xn = x / jnp.maximum(jnp.linalg.norm(x, axis=1, keepdims=True), eps)
    wn = weight / jnp.maximum(jnp.linalg.norm(weight, axis=1, keepdims=True), eps)
    cosine = xn @ wn.T
    sine = jnp.sqrt(jnp.clip(1.0 - cosine ** 2, 0.0, 1.0))
    phi = cosine * math.cos(m) - sine * math.sin(m)
    th = math.cos(math.pi - m)
    mm = math.sin(math.pi - m) * m
    if easy_margin:
        phi = jnp.where(cosine > 0, phi, cosine)
    else:
        phi = jnp.where(cosine > th, phi, cosine - mm)
    one_hot = jax.nn.one_hot(label, cosine.shape[1], dtype=cosine.dtype)
    return (one_hot * phi + (1.0 - one_hot) * cosine) * s


if __name__ == "__main__":
    B = 8                 # batch
    in_features = 128     # D
    out_features = 512    # C (number of classes)

    key = jax.random.PRNGKey(0)
    kx, kw, kl = jax.random.split(key, 3)

    # xavier_uniform_ init for weight of shape (out_features, in_features)
    bound = math.sqrt(6.0 / (in_features + out_features))
    weight = jax.random.uniform(kw, (out_features, in_features),
                                minval=-bound, maxval=bound, dtype=jnp.float32)
    x = jax.random.normal(kx, (B, in_features), dtype=jnp.float32)
    label = jax.random.randint(kl, (B,), 0, out_features, dtype=jnp.int32)

    ref = _reference(x, weight, label, s=30.0, m=0.5, easy_margin=False)

    # f32 MXU path: should match the f32 reference tightly.
    out_f32 = jax.block_until_ready(
        curricular_face_loss(x, weight, label, s=30.0, m=0.5, easy_margin=False,
                             mm_dtype=jnp.float32))
    assert out_f32.shape == (B, out_features)
    assert jnp.allclose(out_f32, ref, atol=1e-3, rtol=1e-4), "f32 path mismatch vs reference"

    # Default bf16 MXU feed (halves the dominant W HBM stream): bf16-level tolerance.
    out_bf16 = jax.block_until_ready(
        curricular_face_loss(x, weight, label, s=30.0, m=0.5, easy_margin=False))
    assert out_bf16.shape == (B, out_features)
    assert jnp.allclose(out_bf16, ref, atol=2e-1, rtol=2e-2), "bf16 path mismatch vs reference"

    print("KERNEL_OK")
</pallas_src>

<mosaic_0001>
module attributes {stable_mosaic.version = 11 : i64} {
  func.func @_curricular_face_kernel(%arg0: i32, %arg1: i32, %arg2: memref<8x128xf32, #tpu.memory_space<vmem>>, %arg3: memref<512x128xf32, #tpu.memory_space<vmem>>, %arg4: memref<8x1xi32, #tpu.memory_space<vmem>>, %arg5: memref<8x1xf32, #tpu.memory_space<vmem>>, %arg6: memref<1x512xf32, #tpu.memory_space<vmem>>, %arg7: memref<8x512xf32, #tpu.memory_space<vmem>>) attributes {dimension_semantics = [#tpu.dimension_semantics<parallel>, #tpu.dimension_semantics<parallel>], iteration_bounds = array<i64: 1, 1>, scalar_prefetch = 0 : i64, scratch_operands = 0 : i64, tpu.core_type = #tpu.core_type<tc>, window_params = [{transform_indices = @transform_0, window_bounds = array<i64: 8, 128>}, {transform_indices = @transform_1, window_bounds = array<i64: 512, 128>}, {transform_indices = @transform_2, window_bounds = array<i64: 8, 1>}, {transform_indices = @transform_3, window_bounds = array<i64: 8, 1>}, {transform_indices = @transform_4, window_bounds = array<i64: 1, 512>}, {transform_indices = @transform_5, window_bounds = array<i64: 8, 512>}]} {
    %c0 = arith.constant 0 : index
    %c0_0 = arith.constant 0 : index
    %0 = vector.load %arg2[%c0, %c0_0] : memref<8x128xf32, #tpu.memory_space<vmem>>, vector<8x128xf32>
    %c0_1 = arith.constant 0 : index
    %c0_2 = arith.constant 0 : index
    %1 = vector.load %arg3[%c0_1, %c0_2] : memref<512x128xf32, #tpu.memory_space<vmem>>, vector<512x128xf32>
    %cst = arith.constant dense<0.000000e+00> : vector<8x512xf32>
    %2 = tpu.matmul %0, %1, %cst {dimension_numbers = #tpu.dot_dimension_numbers<[1], [1], [0], [0], [0, 0, 1, 0], [], []>} : vector<8x128xf32>, vector<512x128xf32>, vector<8x512xf32> -> vector<8x512xf32>
    %c0_3 = arith.constant 0 : index
    %c0_4 = arith.constant 0 : index
    %3 = vector.load %arg5[%c0_3, %c0_4] : memref<8x1xf32, #tpu.memory_space<vmem>>, vector<8x1xf32>
    %4 = vector.broadcast %3 : vector<8x1xf32> to vector<8x512xf32>
    %5 = arith.mulf %2, %4 : vector<8x512xf32>
    %c0_5 = arith.constant 0 : index
    %c0_6 = arith.constant 0 : index
    %6 = vector.load %arg6[%c0_5, %c0_6] : memref<1x512xf32, #tpu.memory_space<vmem>>, vector<1x512xf32>
    %7 = vector.broadcast %6 : vector<1x512xf32> to vector<8x512xf32>
    %8 = arith.mulf %5, %7 : vector<8x512xf32>
    %c512_i32 = arith.constant 512 : i32
    %9 = arith.muli %arg0, %c512_i32 : i32
    %10 = tpu.iota {dimensions = array<i32: 1>} : vector<8x512xi32>
    %11 = vector.broadcast %9 : i32 to vector<8x512xi32>
    %12 = arith.addi %10, %11 : vector<8x512xi32>
    %c0_7 = arith.constant 0 : index
    %c0_8 = arith.constant 0 : index
    %13 = vector.load %arg4[%c0_7, %c0_8] : memref<8x1xi32, #tpu.memory_space<vmem>>, vector<8x1xi32>
    %14 = vector.broadcast %13 : vector<8x1xi32> to vector<8x512xi32>
    %15 = arith.cmpi eq, %12, %14 : vector<8x512xi32>
    %cst_9 = arith.constant 0.000000e+00 : f32
    %16 = vector.broadcast %cst_9 : f32 to vector<8x512xf32>
    %17 = arith.select %15, %8, %16 : vector<8x512xi1>, vector<8x512xf32>
    %cst_10 = arith.constant dense<0.000000e+00> : vector<8xf32>
    %18 = vector.multi_reduction <add>, %17, %cst_10 [1] : vector<8x512xf32> to vector<8xf32>
    %19 = vector.shape_cast %18 : vector<8xf32> to vector<8x1xf32>
    %20 = arith.mulf %19, %19 : vector<8x1xf32>
    %cst_11 = arith.constant 1.000000e+00 : f32
    %21 = vector.broadcast %cst_11 : f32 to vector<8x1xf32>
    %22 = arith.subf %21, %20 : vector<8x1xf32>
    %cst_12 = arith.constant 0.000000e+00 : f32
    %cst_13 = arith.constant 1.000000e+00 : f32
    %23 = vector.broadcast %cst_12 : f32 to vector<8x1xf32>
    %24 = arith.maximumf %23, %22 : vector<8x1xf32>
    %25 = vector.broadcast %cst_13 : f32 to vector<8x1xf32>
    %26 = arith.minimumf %25, %24 : vector<8x1xf32>
    %27 = math.sqrt %26 : vector<8x1xf32>
    %cst_14 = arith.constant 0.87758255 : f32
    %28 = vector.broadcast %cst_14 : f32 to vector<8x1xf32>
    %29 = arith.mulf %19, %28 : vector<8x1xf32>
    %cst_15 = arith.constant 0.47942555 : f32
    %30 = vector.broadcast %cst_15 : f32 to vector<8x1xf32>
    %31 = arith.mulf %27, %30 : vector<8x1xf32>
    %32 = arith.subf %29, %31 : vector<8x1xf32>
    %cst_16 = arith.constant -0.87758255 : f32
    %33 = vector.broadcast %cst_16 : f32 to vector<8x1xf32>
    %34 = arith.cmpf ogt, %19, %33 : vector<8x1xf32>
    %cst_17 = arith.constant 0.239712775 : f32
    %35 = vector.broadcast %cst_17 : f32 to vector<8x1xf32>
    %36 = arith.subf %19, %35 : vector<8x1xf32>
    %37 = arith.select %34, %32, %36 : vector<8x1xi1>, vector<8x1xf32>
    %38 = arith.subf %37, %19 : vector<8x1xf32>
    %cst_18 = arith.constant 3.000000e+01 : f32
    %39 = vector.broadcast %cst_18 : f32 to vector<8x1xf32>
    %40 = arith.mulf %38, %39 : vector<8x1xf32>
    %cst_19 = arith.constant 3.000000e+01 : f32
    %41 = vector.broadcast %cst_19 : f32 to vector<8x512xf32>
    %42 = arith.mulf %8, %41 : vector<8x512xf32>
    %cst_20 = arith.constant 0.000000e+00 : f32
    %43 = vector.shape_cast %40 : vector<8x1xf32> to vector<8x1xf32>
    %44 = vector.broadcast %43 : vector<8x1xf32> to vector<8x512xf32>
    %45 = vector.broadcast %cst_20 : f32 to vector<8x512xf32>
    %46 = arith.select %15, %44, %45 : vector<8x512xi1>, vector<8x512xf32>
    %47 = arith.addf %42, %46 : vector<8x512xf32>
    %c0_21 = arith.constant 0 : index
    %c0_22 = arith.constant 0 : index
    %48 = vector.load %arg7[%c0_21, %c0_22] : memref<8x512xf32, #tpu.memory_space<vmem>>, vector<8x512xf32>
    tpu.vector_store %arg7[%c0_21, %c0_22], %47 {strides = array<i32>} : memref<8x512xf32, #tpu.memory_space<vmem>>, vector<8x512xf32>,
    return
  }
  func.func @transform_0(%arg0: i32, %arg1: i32) -> (i32, i32) {
    %c0_i32 = arith.constant 0 : i32
    %c0_i32_0 = arith.constant 0 : i32
    return %arg1, %c0_i32 : i32, i32
  }
  func.func @transform_1(%arg0: i32, %arg1: i32) -> (i32, i32) {
    %c0_i32 = arith.constant 0 : i32
    %c0_i32_0 = arith.constant 0 : i32
    return %arg0, %c0_i32 : i32, i32
  }
  func.func @transform_2(%arg0: i32, %arg1: i32) -> (i32, i32) {
    %c0_i32 = arith.constant 0 : i32
    %c0_i32_0 = arith.constant 0 : i32
    return %arg1, %c0_i32 : i32, i32
  }
  func.func @transform_3(%arg0: i32, %arg1: i32) -> (i32, i32) {
    %c0_i32 = arith.constant 0 : i32
    %c0_i32_0 = arith.constant 0 : i32
    return %arg1, %c0_i32 : i32, i32
  }
  func.func @transform_4(%arg0: i32, %arg1: i32) -> (i32, i32) {
    %c0_i32 = arith.constant 0 : i32
    %c0_i32_0 = arith.constant 0 : i32
    return %c0_i32, %arg0 : i32, i32
  }
  func.func @transform_5(%arg0: i32, %arg1: i32) -> (i32, i32) {
    %c0_i32 = arith.constant 0 : i32
    return %arg1, %arg0 : i32, i32
  }
}

</mosaic_0001>

<llo_original>
// kernel: tpu_custom_call.1
$region0: #{tpu_custom_call.1}
  #allocation0 [shape = 'u32[]', space=smem, size = 0x4, offset = 0x4, fixed_abs, tag = 'smem constant byte address 0x4 - core index']
  #allocation1 [shape = 'u32[72,128]{1,0:T(1,128)}', space=vmem, size = 0x9000, scoped, tag = 'internal scratch']
  %s0 = inlined_call_operand.vmem [shape: f32[8,128], index: 0, kind: input, shape index: {}]
  %s1 = inlined_call_operand.hbm [shape: f32[512,128], index: 1, kind: input, shape index: {}]
  %s2 = inlined_call_operand.vmem [shape: s32[8,1], index: 2, kind: input, shape index: {}]
  %s3 = inlined_call_operand.vmem [shape: f32[8,1], index: 3, kind: input, shape index: {}]
  %s4 = inlined_call_operand.vmem [shape: f32[1,512], index: 4, kind: input, shape index: {}]
  %s5 = inlined_call_operand.hbm [shape: f32[8,512], index: 5, kind: output, shape index: {}]
  %s6 = sld [smem:[#allocation0]]
  $region34: #{tpu_custom_call.1} parent=0
    _
  %s8 = ssub.s32 1, %s6
  %s9 = scalar_select 0, %s8, %s6
  $region1: #{tpu_custom_call.1} parent=0
    #allocation2 [shape = 'u8[262144]{0}', space=vmem, size = 0x40000, scoped, tag = 'input window, operand 1, single buffered']
    #allocation3 [shape = 's32[1]{0}', space=sflag, size = 0x4, scoped, tag = 'scoped memory for tpu_custom_call.1']
    #allocation4 [shape = 's32[1]{0}', space=sflag, size = 0x4, scoped, tag = 'scoped memory for tpu_custom_call.1']
    #allocation5 [shape = 'u8[16384]{0}', space=vmem, size = 0x4000, scoped, tag = 'output window, operand 0, single buffered']
    %10 = vsyncpa [#allocation3], 0
    %11 = vsyncpa [#allocation4], 0
    // Predicated region
    $region2: #{tpu_custom_call.1} parent=1 // pred_check
      _
    $region3: #{tpu_custom_call.1} parent=1 // pred_check_branch
      %13 = sbr.rel (0) target = $region5
    $region4: #{tpu_custom_call.1} parent=1 // pred_region
      _
    $region5: #{tpu_custom_call.1} parent=1 // pred_fallthru
      _
    // Predicated region
    $region6: #{tpu_custom_call.1} parent=1 // pred_check
      _
    $region7: #{tpu_custom_call.1} parent=1 // pred_check_branch
      %15 = sbr.rel (0) target = $region9
    $region8: #{tpu_custom_call.1} parent=1 // pred_region
      %17 = vsyncadd [#allocation3], 0
      %s18 = sshll.u32 %s1, 4
      %s19 = int_to_ptr.hbm [resolvable:$true] %s18
      %s20 = sshll.u32 [#allocation2], 4
      %s21 = int_to_ptr.vmem [resolvable:$true] %s20
      %26 = dma.hbm_to_vmem [thread:$0]  %s19, 8192, %s21, [#allocation3], 128, 128, 8
    $region9: #{tpu_custom_call.1} parent=1 // pred_fallthru
      _
    // Predicated region
    $region10: #{tpu_custom_call.1} parent=1 // pred_check
      _
    $region11: #{tpu_custom_call.1} parent=1 // pred_check_branch
      %28 = sbr.rel (0) target = $region13
    $region12: #{tpu_custom_call.1} parent=1 // pred_region
      _
    $region13: #{tpu_custom_call.1} parent=1 // pred_fallthru
      _
    // Predicated region
    $region14: #{tpu_custom_call.1} parent=1 // pred_check
      _
    $region15: #{tpu_custom_call.1} parent=1 // pred_check_branch
      %30 = sbr.rel (0) target = $region17
    $region16: #{tpu_custom_call.1} parent=1 // pred_region
      _
    $region17: #{tpu_custom_call.1} parent=1 // pred_fallthru
      _
    // Predicated region
    $region18: #{tpu_custom_call.1} parent=1 // pred_check
      _
    $region19: #{tpu_custom_call.1} parent=1 // pred_check_branch
      %32 = sbr.rel (0) target = $region21
    $region20: #{tpu_custom_call.1} parent=1 // pred_region
      _
    $region21: #{tpu_custom_call.1} parent=1 // pred_fallthru
      _
    // Predicated region
    $region22: #{tpu_custom_call.1} parent=1 // pred_check
      _
    $region23: #{tpu_custom_call.1} parent=1 // pred_check_branch
      %34 = sbr.rel (0) target = $region25
    $region24: #{tpu_custom_call.1} parent=1 // pred_region
      %36 = dma.done [#allocation3], 8192
    $region25: #{tpu_custom_call.1} parent=1 // pred_fallthru
      _
    %v37 = vld [vmem:[%s0] sm:$0xff]
    %v38 = vld [vmem:[#allocation2] sm:$0xff]
    %v39 = vld [vmem:[#allocation2 + $0x8] sm:$0xff]
    %v40 = vld [vmem:[#allocation2 + $0x10] sm:$0xff]
    %v41 = vld [vmem:[#allocation2 + $0x18] sm:$0xff]
    %v42 = vld [vmem:[#allocation2 + $0x20] sm:$0xff]
    %v43 = vld [vmem:[#allocation2 + $0x28] sm:$0xff]
    %v44 = vld [vmem:[#allocation2 + $0x30] sm:$0xff]
    %v45 = vld [vmem:[#allocation2 + $0x38] sm:$0xff]
    %v46 = vld [vmem:[#allocation2 + $0x40] sm:$0xff]
    %v47 = vld [vmem:[#allocation2 + $0x48] sm:$0xff]
    %v48 = vld [vmem:[#allocation2 + $0x50] sm:$0xff]
    %v49 = vld [vmem:[#allocation2 + $0x58] sm:$0xff]
    %v50 = vld [vmem:[#allocation2 + $0x60] sm:$0xff]
    %v51 = vld [vmem:[#allocation2 + $0x68] sm:$0xff]
    %v52 = vld [vmem:[#allocation2 + $0x70] sm:$0xff]
    %v53 = vld [vmem:[#allocation2 + $0x78] sm:$0xff]
    %v54 = vld [vmem:[#allocation2 + $0x80] sm:$0xff]
    %v55 = vld [vmem:[#allocation2 + $0x88] sm:$0xff]
    %v56 = vld [vmem:[#allocation2 + $0x90] sm:$0xff]
    %v57 = vld [vmem:[#allocation2 + $0x98] sm:$0xff]
    %v58 = vld [vmem:[#allocation2 + $0xa0] sm:$0xff]
    %v59 = vld [vmem:[#allocation2 + $0xa8] sm:$0xff]
    %v60 = vld [vmem:[#allocation2 + $0xb0] sm:$0xff]
    %v61 = vld [vmem:[#allocation2 + $0xb8] sm:$0xff]
    %v62 = vld [vmem:[#allocation2 + $0xc0] sm:$0xff]
    %v63 = vld [vmem:[#allocation2 + $0xc8] sm:$0xff]
    %v64 = vld [vmem:[#allocation2 + $0xd0] sm:$0xff]
    %v65 = vld [vmem:[#allocation2 + $0xd8] sm:$0xff]
    %v66 = vld [vmem:[#allocation2 + $0xe0] sm:$0xff]
    %v67 = vld [vmem:[#allocation2 + $0xe8] sm:$0xff]
    %v68 = vld [vmem:[#allocation2 + $0xf0] sm:$0xff]
    %v69 = vld [vmem:[#allocation2 + $0xf8] sm:$0xff]
    %v70 = vld [vmem:[#allocation2 + $0x100] sm:$0xff]
    %v71 = vld [vmem:[#allocation2 + $0x108] sm:$0xff]
    %v72 = vld [vmem:[#allocation2 + $0x110] sm:$0xff]
    %v73 = vld [vmem:[#allocation2 + $0x118] sm:$0xff]
    %v74 = vld [vmem:[#allocation2 + $0x120] sm:$0xff]
    %v75 = vld [vmem:[#allocation2 + $0x128] sm:$0xff]
    %v76 = vld [vmem:[#allocation2 + $0x130] sm:$0xff]
    %v77 = vld [vmem:[#allocation2 + $0x138] sm:$0xff]
    %v78 = vld [vmem:[#allocation2 + $0x140] sm:$0xff]
    %v79 = vld [vmem:[#allocation2 + $0x148] sm:$0xff]
    %v80 = vld [vmem:[#allocation2 + $0x150] sm:$0xff]
    %v81 = vld [vmem:[#allocation2 + $0x158] sm:$0xff]
    %v82 = vld [vmem:[#allocation2 + $0x160] sm:$0xff]
    %v83 = vld [vmem:[#allocation2 + $0x168] sm:$0xff]
    %v84 = vld [vmem:[#allocation2 + $0x170] sm:$0xff]
    %v85 = vld [vmem:[#allocation2 + $0x178] sm:$0xff]
    %v86 = vld [vmem:[#allocation2 + $0x180] sm:$0xff]
    %v87 = vld [vmem:[#allocation2 + $0x188] sm:$0xff]
    %v88 = vld [vmem:[#allocation2 + $0x190] sm:$0xff]
    %v89 = vld [vmem:[#allocation2 + $0x198] sm:$0xff]
    %v90 = vld [vmem:[#allocation2 + $0x1a0] sm:$0xff]
    %v91 = vld [vmem:[#allocation2 + $0x1a8] sm:$0xff]
    %v92 = vld [vmem:[#allocation2 + $0x1b0] sm:$0xff]
    %v93 = vld [vmem:[#allocation2 + $0x1b8] sm:$0xff]
    %v94 = vld [vmem:[#allocation2 + $0x1c0] sm:$0xff]
    %v95 = vld [vmem:[#allocation2 + $0x1c8] sm:$0xff]
    %v96 = vld [vmem:[#allocation2 + $0x1d0] sm:$0xff]
    %v97 = vld [vmem:[#allocation2 + $0x1d8] sm:$0xff]
    %v98 = vld [vmem:[#allocation2 + $0x1e0] sm:$0xff]
    %v99 = vld [vmem:[#allocation2 + $0x1e8] sm:$0xff]
    %v100 = vld [vmem:[#allocation2 + $0x1f0] sm:$0xff]
    %v101 = vld [vmem:[#allocation2 + $0x1f8] sm:$0xff]
    %102 = vmatpush.xpose.msra.mxu0 %v53
    %103 = vmatpush.xpose.msra.mxu0 %v52
    %104 = vmatpush.xpose.msra.mxu0 %v51
    %105 = vmatpush.xpose.msra.mxu0 %v50
    %106 = vmatpush.xpose.msra.mxu0 %v49
    %107 = vmatpush.xpose.msra.mxu0 %v48
    %108 = vmatpush.xpose.msra.mxu0 %v47
    %109 = vmatpush.xpose.msra.mxu0 %v46
    %110 = vmatpush.xpose.msra.mxu0 %v45
    %111 = vmatpush.xpose.msra.mxu0 %v44
    %112 = vmatpush.xpose.msra.mxu0 %v43
    %113 = vmatpush.xpose.msra.mxu0 %v42
    %114 = vmatpush.xpose.msra.mxu0 %v41
    %115 = vmatpush.xpose.msra.mxu0 %v40
    %116 = vmatpush.xpose.msra.mxu0 %v39
    %117 = vmatpush.xpose.msra.mxu0 %v38
    %118 = vmatmul.f32.gmra.mxu0 %v37
    %v119 = vpop.f32.mrf.mxu0
    %v120 = vadd.f32 0.0, %v119
    %121 = vdwg.mxu0
    %122 = vmatpush.xpose.msra.mxu0 %v69
    %123 = vmatpush.xpose.msra.mxu0 %v68
    %124 = vmatpush.xpose.msra.mxu0 %v67
    %125 = vmatpush.xpose.msra.mxu0 %v66
    %126 = vmatpush.xpose.msra.mxu0 %v65
    %127 = vmatpush.xpose.msra.mxu0 %v64
    %128 = vmatpush.xpose.msra.mxu0 %v63
    %129 = vmatpush.xpose.msra.mxu0 %v62
    %130 = vmatpush.xpose.msra.mxu0 %v61
    %131 = vmatpush.xpose.msra.mxu0 %v60
    %132 = vmatpush.xpose.msra.mxu0 %v59
    %133 = vmatpush.xpose.msra.mxu0 %v58
    %134 = vmatpush.xpose.msra.mxu0 %v57
    %135 = vmatpush.xpose.msra.mxu0 %v56
    %136 = vmatpush.xpose.msra.mxu0 %v55
    %137 = vmatpush.xpose.msra.mxu0 %v54
    %138 = vmatmul.f32.gmra.mxu0 %v37
    %v139 = vpop.f32.mrf.mxu0
    %v140 = vadd.f32 0.0, %v139
    %141 = vdwg.mxu0
    %142 = vmatpush.xpose.msra.mxu0 %v85
    %143 = vmatpush.xpose.msra.mxu0 %v84
    %144 = vmatpush.xpose.msra.mxu0 %v83
    %145 = vmatpush.xpose.msra.mxu0 %v82
    %146 = vmatpush.xpose.msra.mxu0 %v81
    %147 = vmatpush.xpose.msra.mxu0 %v80
    %148 = vmatpush.xpose.msra.mxu0 %v79
    %149 = vmatpush.xpose.msra.mxu0 %v78
    %150 = vmatpush.xpose.msra.mxu0 %v77
    %151 = vmatpush.xpose.msra.mxu0 %v76
    %152 = vmatpush.xpose.msra.mxu0 %v75
    %153 = vmatpush.xpose.msra.mxu0 %v74
    %154 = vmatpush.xpose.msra.mxu0 %v73
    %155 = vmatpush.xpose.msra.mxu0 %v72
    %156 = vmatpush.xpose.msra.mxu0 %v71
    %157 = vmatpush.xpose.msra.mxu0 %v70
    %158 = vmatmul.f32.gmra.mxu0 %v37
    %v159 = vpop.f32.mrf.mxu0
    %v160 = vadd.f32 0.0, %v159
    %161 = vdwg.mxu0
    %162 = vmatpush.xpose.msra.mxu0 %v101
    %163 = vmatpush.xpose.msra.mxu0 %v100
    %164 = vmatpush.xpose.msra.mxu0 %v99
    %165 = vmatpush.xpose.msra.mxu0 %v98
    %166 = vmatpush.xpose.msra.mxu0 %v97
    %167 = vmatpush.xpose.msra.mxu0 %v96
    %168 = vmatpush.xpose.msra.mxu0 %v95
    %169 = vmatpush.xpose.msra.mxu0 %v94
    %170 = vmatpush.xpose.msra.mxu0 %v93
    %171 = vmatpush.xpose.msra.mxu0 %v92
    %172 = vmatpush.xpose.msra.mxu0 %v91
    %173 = vmatpush.xpose.msra.mxu0 %v90
    %174 = vmatpush.xpose.msra.mxu0 %v89
    %175 = vmatpush.xpose.msra.mxu0 %v88
    %176 = vmatpush.xpose.msra.mxu0 %v87
    %177 = vmatpush.xpose.msra.mxu0 %v86
    %178 = vmatmul.f32.gmra.mxu0 %v37
    %v179 = vpop.f32.mrf.mxu0
    %v180 = vadd.f32 0.0, %v179
    %181 = vdwg.mxu0
    %v182 = vld [vmem:[%s3] sm:$0xff]
    %184 = vset.pattern.permute.xlu0 0
    %185 = vperm.xlu0 %184, %v182
    %v186 = vpop.permute.xlu0 %185
    %v188 = vmul.f32 %v120, %v186
    %v189 = vmul.f32 %v140, %v186
    %v190 = vmul.f32 %v160, %v186
    %v191 = vmul.f32 %v180, %v186
    %v192 = vld [vmem:[%s4] sm:$0xf]
    %v194 = vperm.slane %v192, 0
    %v195 = vperm.slane %v192, 1
    %v196 = vperm.slane %v192, 2
    %v197 = vperm.slane %v192, 3
    %v202 = vmul.f32 %v188, %v194
    %v203 = vmul.f32 %v189, %v195
    %v204 = vmul.f32 %v190, %v196
    %v205 = vmul.f32 %v191, %v197
    %s206 = smul.u32 0, 512
    %v207 = vlaneseq
    %v208 = vand.u32 %v207, 127
    %v209 = vadd.s32 %v208, 128
    %v210 = vadd.s32 %v208, 256
    %v211 = vadd.s32 %v208, 384
    %v212 = vstv %s206
    %v213 = vadd.s32 %v208, %v212
    %v214 = vadd.s32 %v209, %v212
    %v215 = vadd.s32 %v210, %v212
    %v216 = vadd.s32 %v211, %v212
    %v217 = vld [vmem:[%s2] sm:$0xff]
    %218 = vset.pattern.permute.xlu0 0
    %219 = vperm.xlu0 %218, %v217
    %v220 = vpop.permute.xlu0 %219
    %vm221 = vcmp.eq.s32.totalorder %v213, %v220
    %vm222 = vcmp.eq.s32.totalorder %v214, %v220
    %vm223 = vcmp.eq.s32.totalorder %v215, %v220
    %vm224 = vcmp.eq.s32.totalorder %v216, %v220
    %v225 = vsel %vm221, %v202, 0.0
    %v226 = vsel %vm222, %v203, 0.0
    %v227 = vsel %vm223, %v204, 0.0
    %v228 = vsel %vm224, %v205, 0.0
    %v229 = vadd.f32 %v225, %v226
    %v230 = vadd.f32 %v229, %v227
    %v231 = vadd.f32 %v230, %v228
    %232 = vadd.xlane.f32.xlu0 %v231
    %v233 = vpop.xlane.xlu0 %232
    %v234 = vmul.f32 %v233, %v233
    %v235 = vsub.f32 1.0, %v234
    %v236 = vmax.f32 %v235, 0.0
    %v237 = vmin.f32 %v236, 1.0
    %v238 = vrsqrt.pop %v237
    %v239 = vmul.f32 %v238, %v237
    %v240 = vmul.f32 %v239, %v238
    %v241 = vmul.f32 0.5, %v240
    %v242 = vsub.f32 1.5, %v241
    %v243 = vmul.f32 %v238, %v242
    %v244 = vmul.f32 %v237, %v243
    %vm245 = vcmp.eq.f32.partialorder %v237, inf
    %v246 = vsel %vm245, %v237, %v244
    %vm247 = vcmp.eq.f32.partialorder %v237, 0.0
    %v248 = vand.u32 %v237, 2147483648
    %v249 = vsel %vm247, %v248, %v246
    %v250 = vmul.f32 %v233, 0.87758255
    %v251 = vmul.f32 %v249, 0.47942555
    %v252 = vsub.f32 %v250, %v251
    %vm253 = vcmp.gt.f32.partialorder %v233, -0.87758255
    %v254 = vsub.f32 %v233, 0.23971277
    %v255 = vsel %vm253, %v252, %v254
    %v256 = vsub.f32 %v255, %v233
    %v257 = vmul.f32 %v256, 30.0
    %v258 = vmul.f32 %v202, 30.0
    %v259 = vmul.f32 %v203, 30.0
    %v260 = vmul.f32 %v204, 30.0
    %v261 = vmul.f32 %v205, 30.0
    %v262 = vsel %vm221, %v257, 0.0
    %v263 = vsel %vm222, %v257, 0.0
    %v264 = vsel %vm223, %v257, 0.0
    %v265 = vsel %vm224, %v257, 0.0
    %v266 = vadd.f32 %v258, %v262
    %v267 = vadd.f32 %v259, %v263
    %v268 = vadd.f32 %v260, %v264
    %v269 = vadd.f32 %v261, %v265
    %270 = vst [vmem:[#allocation5] sm:$0xff] %v266
    %271 = vst [vmem:[#allocation5 + $0x8] sm:$0xff] %v267
    %272 = vst [vmem:[#allocation5 + $0x10] sm:$0xff] %v268
    %273 = vst [vmem:[#allocation5 + $0x18] sm:$0xff] %v269
    // Predicated region
    $region26: #{tpu_custom_call.1} parent=1 // pred_check
      _
    $region27: #{tpu_custom_call.1} parent=1 // pred_check_branch
      %275 = sbr.rel (0) target = $region29
    $region28: #{tpu_custom_call.1} parent=1 // pred_region
      %277 = vsyncadd [#allocation4], 0
      %s279 = sshll.u32 [#allocation5], 4
      %s280 = int_to_ptr.vmem [resolvable:$true] %s279
      %s281 = sshll.u32 %s5, 4
      %s282 = int_to_ptr.hbm [resolvable:$true] %s281
      %284 = dma.vmem_to_hbm [thread:$0]  %s280, 512, %s282, [#allocation4]
    $region29: #{tpu_custom_call.1} parent=1 // pred_fallthru
      _
    // Predicated region
    $region30: #{tpu_custom_call.1} parent=1 // pred_check
      _
    $region31: #{tpu_custom_call.1} parent=1 // pred_check_branch
      %286 = sbr.rel (0) target = $region33
    $region32: #{tpu_custom_call.1} parent=1 // pred_region
      %288 = dma.done [#allocation4], 512
    $region33: #{tpu_custom_call.1} parent=1 // pred_fallthru
      _
    %289 = vsyncpa [#allocation3], 1
    %290 = vsyncpa [#allocation4], 1

</llo_original>
